<compile_context>
chip_gen: v7x
topology: tpu7x:2x2x1
jax: 0.10.0
libtpu: 0.0.40
codegen_flags: <defaults>
</compile_context>

<pallas_src>
import jax
import jax.numpy as jnp
from jax.experimental import pallas as pl
from jax.experimental.pallas import tpu as pltpu


def _mlp_kernel(x_ref, w1_ref, b1_ref, w2_ref, b2_ref, w3_ref, b3_ref, o_ref):
    # x_ref: (3, TN); weights are [out, in]; biases are [out, 1] in f32.
    x = x_ref[...]

    # fc1 + relu  -> (16, TN), f32 accumulation on the MXU.
    h1 = jnp.dot(w1_ref[...], x, preferred_element_type=jnp.float32)
    h1 = jnp.maximum(h1 + b1_ref[...], 0.0)

    # fc2 + relu  -> (32, TN), f32 accumulation on the MXU.
    h2 = jnp.dot(w2_ref[...], h1.astype(w2_ref.dtype),
                 preferred_element_type=jnp.float32)
    h2 = jnp.maximum(h2 + b2_ref[...], 0.0)

    # fc3 (32 -> 1): VPU multiply + sublane reduction (avoids a one-column MXU
    # push), then tanh on the EUP and a lane-dense (1, TN) store.
    h3 = jnp.sum(h2 * w3_ref[...].astype(jnp.float32), axis=0, keepdims=True)
    h3 = h3 + b3_ref[...]
    o_ref[...] = jnp.tanh(h3).astype(o_ref.dtype)


def _round_up(x, m):
    return (x + m - 1) // m * m


def transformer_net_forward(x, params, *, tile_n=8192, compute_dtype=None):
    """Forward pass of TransformerNet.

    x: [batch, 3] (PyTorch layout). params: PyTorch nn.Linear layout
    (w: [out, in], b: [out]). Returns [batch, 1] in x.dtype.
    """
    w1, b1, w2, b2, w3, b3 = params
    n = x.shape[0]
    out_dtype = x.dtype
    if compute_dtype is None:
        compute_dtype = x.dtype

    # Batch-on-lanes layout; pad the batch to a multiple of the (128-aligned)
    # tile so every block is full and every store is unmasked.
    n_pad128 = _round_up(max(n, 1), 128)
    tile_n = max(128, min(_round_up(tile_n, 128), n_pad128))
    n_pad = _round_up(n, tile_n)

    xt = jnp.zeros((3, n_pad), compute_dtype).at[:, :n].set(
        x.T.astype(compute_dtype))

    # Weights in [out, in]; w3 as a column vector for the VPU reduction.
    w1c = w1.astype(compute_dtype)                     # (16, 3)
    w2c = w2.astype(compute_dtype)                     # (32, 16)
    w3c = w3.reshape(32, 1).astype(compute_dtype)      # (32, 1)
    b1c = b1.reshape(16, 1).astype(jnp.float32)
    b2c = b2.reshape(32, 1).astype(jnp.float32)
    b3c = b3.reshape(1, 1).astype(jnp.float32)

    grid = (n_pad // tile_n,)

    def const_spec(shape):
        # Same block every grid step -> parameters stay resident in VMEM.
        return pl.BlockSpec(shape, lambda i, _s=shape: tuple(0 for _ in _s))

    out = pl.pallas_call(
        _mlp_kernel,
        out_shape=jax.ShapeDtypeStruct((1, n_pad), out_dtype),
        grid=grid,
        in_specs=[
            pl.BlockSpec((3, tile_n), lambda i: (0, i)),   # x tile, batch on lanes
            const_spec(w1c.shape), const_spec(b1c.shape),
            const_spec(w2c.shape), const_spec(b2c.shape),
            const_spec(w3c.shape), const_spec(b3c.shape),
        ],
        out_specs=pl.BlockSpec((1, tile_n), lambda i: (0, i)),
        compiler_params=pltpu.CompilerParams(
            dimension_semantics=("parallel",),     # shards across TCs on v7x
            vmem_limit_bytes=32 * 1024 * 1024,     # safe on v5e/v6e/v7x
        ),
    )(xt, w1c, b1c, w2c, b2c, w3c, b3c)

    return out[:, :n].T   # back to [batch, 1]


def init_params(key):
    """Deterministic init matching PyTorch nn.Linear layout (w:[out,in], b:[out])."""
    def linear(key, fan_in, fan_out):
        kw, kb = jax.random.split(key)
        bound = 1.0 / jnp.sqrt(fan_in)
        w = jax.random.uniform(kw, (fan_out, fan_in), jnp.float32, -bound, bound)
        b = jax.random.uniform(kb, (fan_out,), jnp.float32, -bound, bound)
        return w, b

    k1, k2, k3 = jax.random.split(key, 3)
    w1, b1 = linear(k1, 3, 16)
    w2, b2 = linear(k2, 16, 32)
    w3, b3 = linear(k3, 32, 1)
    return w1, b1, w2, b2, w3, b3


def reference_forward(x, params):
    """Pure-JAX reference with PyTorch Linear semantics: y = x @ W.T + b."""
    w1, b1, w2, b2, w3, b3 = params
    h1 = jnp.maximum(x @ w1.T + b1, 0.0)
    h2 = jnp.maximum(h1 @ w2.T + b2, 0.0)
    return jnp.tanh(h2 @ w3.T + b3)


if __name__ == "__main__":
    key = jax.random.PRNGKey(0)
    kx, kp = jax.random.split(key)
    params = init_params(kp)

    # Small batch (pads to a single 128-lane tile), f32.
    x_small = jax.random.normal(kx, (8, 3), jnp.float32)
    out_small = jax.block_until_ready(transformer_net_forward(x_small, params))
    ref_small = reference_forward(x_small, params)
    assert out_small.shape == (8, 1), out_small.shape
    assert jnp.allclose(out_small, ref_small, atol=1e-4, rtol=1e-4), \
        "f32 small-batch mismatch vs reference"

    # Ragged multi-tile batch: exercises the batch grid + padding path, f32.
    x_big = jax.random.normal(kx, (1000, 3), jnp.float32)
    out_big = jax.block_until_ready(
        transformer_net_forward(x_big, params, tile_n=256))
    ref_big = reference_forward(x_big, params)
    assert out_big.shape == (1000, 1), out_big.shape
    assert jnp.allclose(out_big, ref_big, atol=1e-4, rtol=1e-4), \
        "f32 multi-tile mismatch vs reference"

    # bf16 inputs/weights with f32 accumulation (memory-bound fast path).
    out_bf16 = jax.block_until_ready(
        transformer_net_forward(x_big, params, tile_n=256,
                                compute_dtype=jnp.bfloat16))
    assert out_bf16.shape == (1000, 1), out_bf16.shape
    assert jnp.allclose(out_bf16, ref_big, atol=5e-2), \
        "bf16 path mismatch vs f32 reference"

    print("KERNEL_OK")
</pallas_src>

<mosaic_0001>
module attributes {stable_mosaic.version = 11 : i64} {
  func.func @_mlp_kernel(%arg0: i32, %arg1: memref<3x128xf32, #tpu.memory_space<vmem>>, %arg2: memref<16x3xf32, #tpu.memory_space<vmem>>, %arg3: memref<16x1xf32, #tpu.memory_space<vmem>>, %arg4: memref<32x16xf32, #tpu.memory_space<vmem>>, %arg5: memref<32x1xf32, #tpu.memory_space<vmem>>, %arg6: memref<32x1xf32, #tpu.memory_space<vmem>>, %arg7: memref<1x1xf32, #tpu.memory_space<vmem>>, %arg8: memref<1x128xf32, #tpu.memory_space<vmem>>) attributes {dimension_semantics = [#tpu.dimension_semantics<parallel>], iteration_bounds = array<i64: 1>, scalar_prefetch = 0 : i64, scratch_operands = 0 : i64, tpu.core_type = #tpu.core_type<tc>, window_params = [{transform_indices = @transform_0, window_bounds = array<i64: 3, 128>}, {pipeline_mode = #tpu.pipeline_mode<synchronous>, transform_indices = @transform_1, window_bounds = array<i64: 16, 3>}, {pipeline_mode = #tpu.pipeline_mode<synchronous>, transform_indices = @transform_2, window_bounds = array<i64: 16, 1>}, {pipeline_mode = #tpu.pipeline_mode<synchronous>, transform_indices = @transform_3, window_bounds = array<i64: 32, 16>}, {pipeline_mode = #tpu.pipeline_mode<synchronous>, transform_indices = @transform_4, window_bounds = array<i64: 32, 1>}, {pipeline_mode = #tpu.pipeline_mode<synchronous>, transform_indices = @transform_5, window_bounds = array<i64: 32, 1>}, {pipeline_mode = #tpu.pipeline_mode<synchronous>, transform_indices = @transform_6, window_bounds = array<i64: 1, 1>}, {transform_indices = @transform_7, window_bounds = array<i64: 1, 128>}]} {
    %c0 = arith.constant 0 : index
    %c0_0 = arith.constant 0 : index
    %0 = vector.load %arg1[%c0, %c0_0] : memref<3x128xf32, #tpu.memory_space<vmem>>, vector<3x128xf32>
    %c0_1 = arith.constant 0 : index
    %c0_2 = arith.constant 0 : index
    %1 = vector.load %arg2[%c0_1, %c0_2] : memref<16x3xf32, #tpu.memory_space<vmem>>, vector<16x3xf32>
    %cst = arith.constant dense<0.000000e+00> : vector<16x128xf32>
    %2 = tpu.matmul %1, %0, %cst {dimension_numbers = #tpu.dot_dimension_numbers<[1], [0], [0], [1], [0, 0, 1, 1], [], []>} : vector<16x3xf32>, vector<3x128xf32>, vector<16x128xf32> -> vector<16x128xf32>
    %c0_3 = arith.constant 0 : index
    %c0_4 = arith.constant 0 : index
    %3 = vector.load %arg3[%c0_3, %c0_4] : memref<16x1xf32, #tpu.memory_space<vmem>>, vector<16x1xf32>
    %4 = vector.broadcast %3 : vector<16x1xf32> to vector<16x128xf32>
    %5 = arith.addf %2, %4 : vector<16x128xf32>
    %cst_5 = arith.constant 0.000000e+00 : f32
    %6 = vector.broadcast %cst_5 : f32 to vector<16x128xf32>
    %7 = arith.maximumf %5, %6 : vector<16x128xf32>
    %c0_6 = arith.constant 0 : index
    %c0_7 = arith.constant 0 : index
    %8 = vector.load %arg4[%c0_6, %c0_7] : memref<32x16xf32, #tpu.memory_space<vmem>>, vector<32x16xf32>
    %cst_8 = arith.constant dense<0.000000e+00> : vector<32x128xf32>
    %9 = tpu.matmul %8, %7, %cst_8 {dimension_numbers = #tpu.dot_dimension_numbers<[1], [0], [0], [1], [0, 0, 1, 1], [], []>} : vector<32x16xf32>, vector<16x128xf32>, vector<32x128xf32> -> vector<32x128xf32>
    %c0_9 = arith.constant 0 : index
    %c0_10 = arith.constant 0 : index
    %10 = vector.load %arg5[%c0_9, %c0_10] : memref<32x1xf32, #tpu.memory_space<vmem>>, vector<32x1xf32>
    %11 = vector.broadcast %10 : vector<32x1xf32> to vector<32x128xf32>
    %12 = arith.addf %9, %11 : vector<32x128xf32>
    %cst_11 = arith.constant 0.000000e+00 : f32
    %13 = vector.broadcast %cst_11 : f32 to vector<32x128xf32>
    %14 = arith.maximumf %12, %13 : vector<32x128xf32>
    %c0_12 = arith.constant 0 : index
    %c0_13 = arith.constant 0 : index
    %15 = vector.load %arg6[%c0_12, %c0_13] : memref<32x1xf32, #tpu.memory_space<vmem>>, vector<32x1xf32>
    %16 = vector.broadcast %15 : vector<32x1xf32> to vector<32x128xf32>
    %17 = arith.mulf %14, %16 : vector<32x128xf32>
    %cst_14 = arith.constant dense<0.000000e+00> : vector<128xf32>
    %18 = vector.multi_reduction <add>, %17, %cst_14 [0] : vector<32x128xf32> to vector<128xf32>
    %19 = vector.shape_cast %18 : vector<128xf32> to vector<1x128xf32>
    %c0_15 = arith.constant 0 : index
    %c0_16 = arith.constant 0 : index
    %20 = vector.load %arg7[%c0_15, %c0_16] : memref<1x1xf32, #tpu.memory_space<vmem>>, vector<1x1xf32>
    %21 = vector.broadcast %20 : vector<1x1xf32> to vector<1x128xf32>
    %22 = arith.addf %19, %21 : vector<1x128xf32>
    %23 = math.tanh %22 : vector<1x128xf32>
    %c0_17 = arith.constant 0 : index
    %c0_18 = arith.constant 0 : index
    %24 = vector.load %arg8[%c0_17, %c0_18] : memref<1x128xf32, #tpu.memory_space<vmem>>, vector<1x128xf32>
    tpu.vector_store %arg8[%c0_17, %c0_18], %23 {strides = array<i32>} : memref<1x128xf32, #tpu.memory_space<vmem>>, vector<1x128xf32>,
    return
  }
  func.func @transform_0(%arg0: i32) -> (i32, i32) {
    %c0_i32 = arith.constant 0 : i32
    %c0_i32_0 = arith.constant 0 : i32
    return %c0_i32, %arg0 : i32, i32
  }
  func.func @transform_1(%arg0: i32) -> (i32, i32) {
    %c0_i32 = arith.constant 0 : i32
    %c0_i32_0 = arith.constant 0 : i32
    %c0_i32_1 = arith.constant 0 : i32
    return %c0_i32, %c0_i32_0 : i32, i32
  }
  func.func @transform_2(%arg0: i32) -> (i32, i32) {
    %c0_i32 = arith.constant 0 : i32
    %c0_i32_0 = arith.constant 0 : i32
    %c0_i32_1 = arith.constant 0 : i32
    return %c0_i32, %c0_i32_0 : i32, i32
  }
  func.func @transform_3(%arg0: i32) -> (i32, i32) {
    %c0_i32 = arith.constant 0 : i32
    %c0_i32_0 = arith.constant 0 : i32
    %c0_i32_1 = arith.constant 0 : i32
    return %c0_i32, %c0_i32_0 : i32, i32
  }
  func.func @transform_4(%arg0: i32) -> (i32, i32) {
    %c0_i32 = arith.constant 0 : i32
    %c0_i32_0 = arith.constant 0 : i32
    %c0_i32_1 = arith.constant 0 : i32
    return %c0_i32, %c0_i32_0 : i32, i32
  }
  func.func @transform_5(%arg0: i32) -> (i32, i32) {
    %c0_i32 = arith.constant 0 : i32
    %c0_i32_0 = arith.constant 0 : i32
    %c0_i32_1 = arith.constant 0 : i32
    return %c0_i32, %c0_i32_0 : i32, i32
  }
  func.func @transform_6(%arg0: i32) -> (i32, i32) {
    %c0_i32 = arith.constant 0 : i32
    %c0_i32_0 = arith.constant 0 : i32
    %c0_i32_1 = arith.constant 0 : i32
    return %c0_i32, %c0_i32_0 : i32, i32
  }
  func.func @transform_7(%arg0: i32) -> (i32, i32) {
    %c0_i32 = arith.constant 0 : i32
    %c0_i32_0 = arith.constant 0 : i32
    return %c0_i32, %arg0 : i32, i32
  }
}

</mosaic_0001>

<llo_original>
// kernel: tpu_custom_call.1
$region0: #{tpu_custom_call.1}
  #allocation0 [shape = 'u32[]', space=smem, size = 0x4, offset = 0x4, fixed_abs, tag = 'smem constant byte address 0x4 - core index']
  #allocation1 [shape = 'u32[144,128]{1,0:T(1,128)}', space=vmem, size = 0x12000, scoped, tag = 'internal scratch']
  #allocation2 [shape = 'f32[1,1]{1,0:T(1,128)S(1)}', space=vmem, size = 0x200, scoped, tag = 'scoped memory for tpu_custom_call.1']
  %s0 = inlined_call_operand.vmem [shape: f32[3,128], index: 0, kind: input, shape index: {}]
  %s1 = inlined_call_operand.vmem [shape: f32[16,3], index: 1, kind: input, shape index: {}]
  %s2 = inlined_call_operand.vmem [shape: f32[16,1], index: 2, kind: input, shape index: {}]
  %s3 = inlined_call_operand.vmem [shape: f32[32,16], index: 3, kind: input, shape index: {}]
  %s4 = inlined_call_operand.vmem [shape: f32[32,1], index: 4, kind: input, shape index: {}]
  %s5 = inlined_call_operand.vmem [shape: f32[32,1], index: 5, kind: input, shape index: {}]
  %s6 = inlined_call_operand.<no memory space> [shape: f32[1,1], index: 6, kind: input, shape index: {}]
  %s7 = inlined_call_operand.hbm [shape: f32[1,128], index: 7, kind: output, shape index: {}]
  %s8 = sld [smem:[#allocation0]]
  $region38: #{tpu_custom_call.1} parent=0
    _
  %s10 = ssub.s32 1, %s8
  %s11 = scalar_select 0, %s10, %s8
  %v12 = vstv %s6
  %13 = vst [vmem:[#allocation2] sm:$0x1] %v12
  $region1: #{tpu_custom_call.1} parent=0
    #allocation3 [shape = 'u8[512]{0}', space=vmem, size = 0x400, scoped, tag = 'output window, operand 0, single buffered']
    #allocation4 [shape = 's32[1]{0}', space=sflag, size = 0x4, scoped, tag = 'scoped memory for tpu_custom_call.1']
    %14 = vsyncpa [#allocation4], 0
    // Predicated region
    $region2: #{tpu_custom_call.1} parent=1 // pred_check
      _
    $region3: #{tpu_custom_call.1} parent=1 // pred_check_branch
      %16 = sbr.rel (0) target = $region5
    $region4: #{tpu_custom_call.1} parent=1 // pred_region
      _
    $region5: #{tpu_custom_call.1} parent=1 // pred_fallthru
      _
    // Predicated region
    $region6: #{tpu_custom_call.1} parent=1 // pred_check
      _
    $region7: #{tpu_custom_call.1} parent=1 // pred_check_branch
      %18 = sbr.rel (0) target = $region9
    $region8: #{tpu_custom_call.1} parent=1 // pred_region
      _
    $region9: #{tpu_custom_call.1} parent=1 // pred_fallthru
      _
    // Predicated region
    $region10: #{tpu_custom_call.1} parent=1 // pred_check
      _
    $region11: #{tpu_custom_call.1} parent=1 // pred_check_branch
      %20 = sbr.rel (0) target = $region13
    $region12: #{tpu_custom_call.1} parent=1 // pred_region
      _
    $region13: #{tpu_custom_call.1} parent=1 // pred_fallthru
      _
    // Predicated region
    $region14: #{tpu_custom_call.1} parent=1 // pred_check
      _
    $region15: #{tpu_custom_call.1} parent=1 // pred_check_branch
      %22 = sbr.rel (0) target = $region17
    $region16: #{tpu_custom_call.1} parent=1 // pred_region
      _
    $region17: #{tpu_custom_call.1} parent=1 // pred_fallthru
      _
    // Predicated region
    $region18: #{tpu_custom_call.1} parent=1 // pred_check
      _
    $region19: #{tpu_custom_call.1} parent=1 // pred_check_branch
      %24 = sbr.rel (0) target = $region21
    $region20: #{tpu_custom_call.1} parent=1 // pred_region
      _
    $region21: #{tpu_custom_call.1} parent=1 // pred_fallthru
      _
    // Predicated region
    $region22: #{tpu_custom_call.1} parent=1 // pred_check
      _
    $region23: #{tpu_custom_call.1} parent=1 // pred_check_branch
      %26 = sbr.rel (0) target = $region25
    $region24: #{tpu_custom_call.1} parent=1 // pred_region
      _
    $region25: #{tpu_custom_call.1} parent=1 // pred_fallthru
      _
    // Predicated region
    $region26: #{tpu_custom_call.1} parent=1 // pred_check
      _
    $region27: #{tpu_custom_call.1} parent=1 // pred_check_branch
      %28 = sbr.rel (0) target = $region29
    $region28: #{tpu_custom_call.1} parent=1 // pred_region
      _
    $region29: #{tpu_custom_call.1} parent=1 // pred_fallthru
      _
    %v29 = vld [vmem:[%s0] sm:$0x7]
    %v30 = vld [vmem:[%s1] sm:$0xff]
    %v31 = vld [vmem:[%s1 + $0x8] sm:$0xff]
    %v32 = vld [vmem:[%s2] sm:$0xff]
    %v33 = vld [vmem:[%s2 + $0x8] sm:$0xff]
    %35 = vset.pattern.permute.xlu0 0
    %36 = vperm.xlu0 %35, %v32
    %v37 = vpop.permute.xlu0 %36
    %40 = vset.pattern.permute.xlu0 0
    %41 = vperm.xlu0 %40, %v33
    %v42 = vpop.permute.xlu0 %41
    %vm44 = vcmask 23552
    %v46 = vsel %vm44, %v30, 0
    %v49 = vsel %vm44, %v31, 0
    %vm51 = vcmask 1042432
    %v53 = vsel %vm51, %v29, 0
    %55 = vmatprep.subr.mxu0 0.0
    %56 = vmatpush1.msra.mxu0 %v53
    %57 = vmatprep.subr.mxu0 0.0
    %58 = vmatpush1.msra.mxu0 0.0
    %59 = vmatprep.subr.mxu0 0.0
    %60 = vmatpush1.msra.mxu0 0.0
    %61 = vmatprep.subr.mxu0 0.0
    %62 = vmatpush1.msra.mxu0 0.0
    %63 = vmatprep.subr.mxu0 0.0
    %64 = vmatpush1.msra.mxu0 0.0
    %65 = vmatprep.subr.mxu0 0.0
    %66 = vmatpush1.msra.mxu0 0.0
    %67 = vmatprep.subr.mxu0 0.0
    %68 = vmatpush1.msra.mxu0 0.0
    %69 = vmatprep.subr.mxu0 0.0
    %70 = vmatpush1.msra.mxu0 0.0
    %71 = vmatprep.subr.mxu0 0.0
    %72 = vmatpush1.msra.mxu0 0.0
    %73 = vmatprep.subr.mxu0 0.0
    %74 = vmatpush1.msra.mxu0 0.0
    %75 = vmatprep.subr.mxu0 0.0
    %76 = vmatpush1.msra.mxu0 0.0
    %77 = vmatprep.subr.mxu0 0.0
    %78 = vmatpush1.msra.mxu0 0.0
    %79 = vmatprep.subr.mxu0 0.0
    %80 = vmatpush1.msra.mxu0 0.0
    %81 = vmatprep.subr.mxu0 0.0
    %82 = vmatpush1.msra.mxu0 0.0
    %83 = vmatprep.subr.mxu0 0.0
    %84 = vmatpush1.msra.mxu0 0.0
    %85 = vmatprep.subr.mxu0 0.0
    %86 = vmatpush1.msra.mxu0 0.0
    %87 = vmatprep.subr.mxu0 0.0
    %88 = vmatpush1.msra.mxu0 0.0
    %89 = vmatprep.subr.mxu0 0.0
    %90 = vmatpush1.msra.mxu0 0.0
    %91 = vmatprep.subr.mxu0 0.0
    %92 = vmatpush1.msra.mxu0 0.0
    %93 = vmatprep.subr.mxu0 0.0
    %94 = vmatpush1.msra.mxu0 0.0
    %95 = vmatprep.subr.mxu0 0.0
    %96 = vmatpush1.msra.mxu0 0.0
    %97 = vmatprep.subr.mxu0 0.0
    %98 = vmatpush1.msra.mxu0 0.0
    %99 = vmatprep.subr.mxu0 0.0
    %100 = vmatpush1.msra.mxu0 0.0
    %101 = vmatprep.subr.mxu0 0.0
    %102 = vmatpush1.msra.mxu0 0.0
    %103 = vmatprep.subr.mxu0 0.0
    %104 = vmatpush1.msra.mxu0 0.0
    %105 = vmatprep.subr.mxu0 0.0
    %106 = vmatpush1.msra.mxu0 0.0
    %107 = vmatprep.subr.mxu0 0.0
    %108 = vmatpush1.msra.mxu0 0.0
    %109 = vmatprep.subr.mxu0 0.0
    %110 = vmatpush1.msra.mxu0 0.0
    %111 = vmatprep.subr.mxu0 0.0
    %112 = vmatpush1.msra.mxu0 0.0
    %113 = vmatprep.subr.mxu0 0.0
    %114 = vmatpush1.msra.mxu0 0.0
    %115 = vmatprep.subr.mxu0 0.0
    %116 = vmatpush1.msra.mxu0 0.0
    %117 = vmatprep.subr.mxu0 0.0
    %118 = vmatpush1.msra.mxu0 0.0
    %119 = vmatprep.mubr.f32.mxu0 0.0
    %120 = vmatmul.mubr.f32.gmra.mrb[0].mxu0 %v46
    %v121 = vpop.f32.mrb[0].mxu0
    %v122 = vadd.f32 %v37, %v121
    %v123 = vpop.f32.mrb[0].mxu0
    %124 = vmatprep.mubr.f32.mxu0 0.0
    %125 = vmatmul.mubr.f32.gmra.mrb[0].mxu0 %v49
    %v126 = vpop.f32.mrb[0].mxu0
    %v127 = vadd.f32 %v42, %v126
    %v128 = vpop.f32.mrb[0].mxu0
    %129 = vdwg.mxu0
    %v130 = vmax.f32 %v122, 0.0
    %v131 = vmax.f32 %v127, 0.0
    %v132 = vld [vmem:[%s3] sm:$0xff]
    %v133 = vld [vmem:[%s3 + $0x8] sm:$0xff]
    %v134 = vld [vmem:[%s3 + $0x10] sm:$0xff]
    %v135 = vld [vmem:[%s3 + $0x18] sm:$0xff]
    %v136 = vld [vmem:[%s4] sm:$0xff]
    %v137 = vld [vmem:[%s4 + $0x8] sm:$0xff]
    %v138 = vld [vmem:[%s4 + $0x10] sm:$0xff]
    %v139 = vld [vmem:[%s4 + $0x18] sm:$0xff]
    %141 = vset.pattern.permute.xlu0 0
    %142 = vperm.xlu0 %141, %v136
    %v143 = vpop.permute.xlu0 %142
    %146 = vset.pattern.permute.xlu0 0
    %147 = vperm.xlu0 %146, %v137
    %v148 = vpop.permute.xlu0 %147
    %151 = vset.pattern.permute.xlu0 0
    %152 = vperm.xlu0 %151, %v138
    %v153 = vpop.permute.xlu0 %152
    %156 = vset.pattern.permute.xlu0 0
    %157 = vperm.xlu0 %156, %v139
    %v158 = vpop.permute.xlu0 %157
    %vm160 = vcmask 130048
    %v162 = vsel %vm160, %v132, 0
    %v165 = vsel %vm160, %v133, 0
    %v168 = vsel %vm160, %v134, 0
    %v171 = vsel %vm160, %v135, 0
    %173 = vmatprep.subr.mxu0 0.0
    %174 = vmatpush1.msra.mxu0 %v130
    %175 = vmatprep.subr.mxu0 0.0
    %176 = vmatpush1.msra.mxu0 %v131
    %177 = vmatprep.subr.mxu0 0.0
    %178 = vmatpush1.msra.mxu0 0.0
    %179 = vmatprep.subr.mxu0 0.0
    %180 = vmatpush1.msra.mxu0 0.0
    %181 = vmatprep.subr.mxu0 0.0
    %182 = vmatpush1.msra.mxu0 0.0
    %183 = vmatprep.subr.mxu0 0.0
    %184 = vmatpush1.msra.mxu0 0.0
    %185 = vmatprep.subr.mxu0 0.0
    %186 = vmatpush1.msra.mxu0 0.0
    %187 = vmatprep.subr.mxu0 0.0
    %188 = vmatpush1.msra.mxu0 0.0
    %189 = vmatprep.subr.mxu0 0.0
    %190 = vmatpush1.msra.mxu0 0.0
    %191 = vmatprep.subr.mxu0 0.0
    %192 = vmatpush1.msra.mxu0 0.0
    %193 = vmatprep.subr.mxu0 0.0
    %194 = vmatpush1.msra.mxu0 0.0
    %195 = vmatprep.subr.mxu0 0.0
    %196 = vmatpush1.msra.mxu0 0.0
    %197 = vmatprep.subr.mxu0 0.0
    %198 = vmatpush1.msra.mxu0 0.0
    %199 = vmatprep.subr.mxu0 0.0
    %200 = vmatpush1.msra.mxu0 0.0
    %201 = vmatprep.subr.mxu0 0.0
    %202 = vmatpush1.msra.mxu0 0.0
    %203 = vmatprep.subr.mxu0 0.0
    %204 = vmatpush1.msra.mxu0 0.0
    %205 = vmatprep.subr.mxu0 0.0
    %206 = vmatpush1.msra.mxu0 0.0
    %207 = vmatprep.subr.mxu0 0.0
    %208 = vmatpush1.msra.mxu0 0.0
    %209 = vmatprep.subr.mxu0 0.0
    %210 = vmatpush1.msra.mxu0 0.0
    %211 = vmatprep.subr.mxu0 0.0
    %212 = vmatpush1.msra.mxu0 0.0
    %213 = vmatprep.subr.mxu0 0.0
    %214 = vmatpush1.msra.mxu0 0.0
    %215 = vmatprep.subr.mxu0 0.0
    %216 = vmatpush1.msra.mxu0 0.0
    %217 = vmatprep.subr.mxu0 0.0
    %218 = vmatpush1.msra.mxu0 0.0
    %219 = vmatprep.subr.mxu0 0.0
    %220 = vmatpush1.msra.mxu0 0.0
    %221 = vmatprep.subr.mxu0 0.0
    %222 = vmatpush1.msra.mxu0 0.0
    %223 = vmatprep.subr.mxu0 0.0
    %224 = vmatpush1.msra.mxu0 0.0
    %225 = vmatprep.subr.mxu0 0.0
    %226 = vmatpush1.msra.mxu0 0.0
    %227 = vmatprep.subr.mxu0 0.0
    %228 = vmatpush1.msra.mxu0 0.0
    %229 = vmatprep.subr.mxu0 0.0
    %230 = vmatpush1.msra.mxu0 0.0
    %231 = vmatprep.subr.mxu0 0.0
    %232 = vmatpush1.msra.mxu0 0.0
    %233 = vmatprep.subr.mxu0 0.0
    %234 = vmatpush1.msra.mxu0 0.0
    %235 = vmatprep.subr.mxu0 0.0
    %236 = vmatpush1.msra.mxu0 0.0
    %237 = vmatprep.mubr.f32.mxu0 0.0
    %238 = vmatmul.mubr.f32.gmra.mrb[0].mxu0 %v162
    %v239 = vpop.f32.mrb[0].mxu0
    %v240 = vadd.f32 %v143, %v239
    %v241 = vpop.f32.mrb[0].mxu0
    %242 = vmatprep.mubr.f32.mxu0 0.0
    %243 = vmatmul.mubr.f32.gmra.mrb[0].mxu0 %v165
    %v244 = vpop.f32.mrb[0].mxu0
    %v245 = vadd.f32 %v148, %v244
    %v246 = vpop.f32.mrb[0].mxu0
    %247 = vmatprep.mubr.f32.mxu0 0.0
    %248 = vmatmul.mubr.f32.gmra.mrb[0].mxu0 %v168
    %v249 = vpop.f32.mrb[0].mxu0
    %v250 = vadd.f32 %v153, %v249
    %v251 = vpop.f32.mrb[0].mxu0
    %252 = vmatprep.mubr.f32.mxu0 0.0
    %253 = vmatmul.mubr.f32.gmra.mrb[0].mxu0 %v171
    %v254 = vpop.f32.mrb[0].mxu0
    %v255 = vadd.f32 %v158, %v254
    %v256 = vpop.f32.mrb[0].mxu0
    %257 = vdwg.mxu0
    %v258 = vmax.f32 %v240, 0.0
    %v259 = vmax.f32 %v245, 0.0
    %v260 = vmax.f32 %v250, 0.0
    %v261 = vmax.f32 %v255, 0.0
    %v262 = vld [vmem:[%s5] sm:$0xff]
    %v263 = vld [vmem:[%s5 + $0x8] sm:$0xff]
    %v264 = vld [vmem:[%s5 + $0x10] sm:$0xff]
    %v265 = vld [vmem:[%s5 + $0x18] sm:$0xff]
    %267 = vset.pattern.permute.xlu0 0
    %268 = vperm.xlu0 %267, %v262
    %v269 = vpop.permute.xlu0 %268
    %272 = vset.pattern.permute.xlu0 0
    %273 = vperm.xlu0 %272, %v263
    %v274 = vpop.permute.xlu0 %273
    %277 = vset.pattern.permute.xlu0 0
    %278 = vperm.xlu0 %277, %v264
    %v279 = vpop.permute.xlu0 %278
    %282 = vset.pattern.permute.xlu0 0
    %283 = vperm.xlu0 %282, %v265
    %v284 = vpop.permute.xlu0 %283
    %v286 = vmul.f32 %v258, %v269
    %v287 = vmul.f32 %v259, %v274
    %v288 = vmul.f32 %v260, %v279
    %v289 = vmul.f32 %v261, %v284
    %v290 = vadd.f32 %v286, %v287
    %v291 = vadd.f32 %v290, %v288
    %v292 = vadd.f32 %v291, %v289
    %v293 = vrot.slane %v292, 4
    %v294 = vadd.f32 %v292, %v293
    %v295 = vrot.slane %v294, 2
    %v296 = vadd.f32 %v294, %v295
    %v297 = vrot.slane %v296, 1
    %v298 = vadd.f32 %v296, %v297
    %v299 = vld [vmem:[#allocation2] sm:$0x1]
    %301 = vset.pattern.permute.xlu0 0
    %302 = vperm.xlu0 %301, %v299
    %v303 = vpop.permute.xlu0 %302
    %v305 = vlaneseq
    %v306 = vshrl.u32 %v305, 7
    %v307 = vsub.s32 0, %v306
    %v308 = vrot.slane %v303, %v307
    %v309 = vadd.f32 %v298, %v308
    %v310 = vtanh.pop %v309
    %311 = vst [vmem:[#allocation3] sm:$0x1] %v310
    // Predicated region
    $region30: #{tpu_custom_call.1} parent=1 // pred_check
      _
    $region31: #{tpu_custom_call.1} parent=1 // pred_check_branch
      %313 = sbr.rel (0) target = $region33
    $region32: #{tpu_custom_call.1} parent=1 // pred_region
      %s315 = ssub.s32 16, 16
      %316 = vsyncadd [#allocation4], %s315
      %s318 = sshll.u32 [#allocation3], 4
      %s319 = int_to_ptr.vmem [resolvable:$true] %s318
      %321 = dma.vmem_to_hbm [thread:$0]  %s319, 16, %s7, [#allocation4]
    $region33: #{tpu_custom_call.1} parent=1 // pred_fallthru
      _
    // Predicated region
    $region34: #{tpu_custom_call.1} parent=1 // pred_check
      _
    $region35: #{tpu_custom_call.1} parent=1 // pred_check_branch
      %323 = sbr.rel (0) target = $region37
    $region36: #{tpu_custom_call.1} parent=1 // pred_region
      %324 = dma.done [#allocation4], 16
    $region37: #{tpu_custom_call.1} parent=1 // pred_fallthru
      _
    %325 = vsyncpa [#allocation4], 1

</llo_original>
